<compile_context>
chip_gen: v5e
topology: v5e:2x2
jax: 0.10.0
libtpu: 0.0.40
codegen_flags: <defaults>
</compile_context>

<pallas_src>
import jax
import jax.numpy as jnp
from jax.experimental import pallas as pl
from jax.experimental.pallas import tpu as pltpu

GAMMA = 1.5
ALPHA = 0.25
EPSILON = 1.0

LANE = 512               # lane-dense last dim (multiple of 128) -> unmasked vst path
SUBLANE = 8
MAX_BLOCK_ROWS = 2048    # 2048 x 512 x 4B = 4 MiB per f32 tile per array


def _polyloss_kernel(pred_ref, true_ref, out_ref):
    x = pred_ref[...].astype(jnp.float32)
    y = true_ref[...].astype(jnp.float32)

    # Single shared exponential: e = exp(-|x|) serves both BCE and sigmoid.
    e = jnp.exp(-jnp.abs(x))

    # BCEWithLogitsLoss (numerically stable form, reduction='none')
    bce = jnp.maximum(x, 0.0) - x * y + jnp.log1p(e)

    # sigmoid(x) = 1/(1+e) for x>=0, e/(1+e) for x<0 (one exp, one exact reciprocal)
    inv_one_plus_e = pl.reciprocal(1.0 + e)
    p = jnp.where(x >= 0.0, inv_one_plus_e, e * inv_one_plus_e)

    # 1 - p_t = 1 - (y*p + (1-y)*(1-p)) = p + y - 2*y*p
    one_minus_pt = p + y - 2.0 * (y * p)

    # alpha_factor = y*alpha + (1-y)*(1-alpha) = (1-alpha) - (1-2*alpha)*y
    alpha_factor = (1.0 - ALPHA) - (1.0 - 2.0 * ALPHA) * y

    # (1 - p_t)^1.5 = (1-p_t) * sqrt(1-p_t): one sqrt instead of exp+log.
    modulating_factor = one_minus_pt * jnp.sqrt(one_minus_pt)

    loss = bce * alpha_factor * modulating_factor
    # alpha >= 0 branch: identical factor applied again, matching the reference.
    loss = alpha_factor * loss

    # (1 - p_t)^(gamma + 1) = modulating_factor * one_minus_pt (no jnp.power)
    polyloss_val = loss + EPSILON * modulating_factor * one_minus_pt
    out_ref[...] = polyloss_val.astype(out_ref.dtype)


def _round_up(a, b):
    return ((a + b - 1) // b) * b


def _choose_block_rows(rows):
    """Pick a block row count: multiple of 8, or equal to the full dim (tiny case)."""
    if rows <= 2 * SUBLANE:
        # Tiny tensor: one block equal to the full array dim (legal for any rows).
        return rows
    if rows <= 2 * MAX_BLOCK_ROWS:
        # Split so there are >= 2 grid steps (keeps both v7x TensorCores busy).
        return min(MAX_BLOCK_ROWS, _round_up(pl.cdiv(rows, 2), SUBLANE))
    return MAX_BLOCK_ROWS


def polyloss(pred, true):
    """pred, true: float arrays of identical shape. Returns elementwise PolyLoss."""
    assert pred.shape == true.shape
    orig_shape = pred.shape
    total = pred.size

    rows = pl.cdiv(total, LANE)
    pad = rows * LANE - total

    pred_flat = pred.reshape(-1)
    true_flat = true.reshape(-1)
    if pad:
        # Only when total is not LANE-aligned (never rounded up to block multiples).
        pred_flat = jnp.pad(pred_flat, (0, pad))
        true_flat = jnp.pad(true_flat, (0, pad))
    pred_f = pred_flat.reshape(rows, LANE)
    true_f = true_flat.reshape(rows, LANE)

    block_rows = _choose_block_rows(rows)
    grid = (pl.cdiv(rows, block_rows),)   # ragged last block handled by Pallas

    # 3 arrays x 2 pipeline buffers x tile, plus headroom for compiler scratch.
    tile_bytes = block_rows * LANE * 4
    vmem_limit = min(3 * 2 * tile_bytes + (16 << 20), 48 << 20)

    out = pl.pallas_call(
        _polyloss_kernel,
        out_shape=jax.ShapeDtypeStruct((rows, LANE), pred.dtype),
        grid=grid,
        in_specs=[
            pl.BlockSpec((block_rows, LANE), lambda i: (i, 0)),
            pl.BlockSpec((block_rows, LANE), lambda i: (i, 0)),
        ],
        out_specs=pl.BlockSpec((block_rows, LANE), lambda i: (i, 0)),
        compiler_params=pltpu.CompilerParams(
            dimension_semantics=("parallel",),
            vmem_limit_bytes=vmem_limit,
        ),
    )(pred_f, true_f)

    out_flat = out.reshape(-1)
    if pad:
        out_flat = out_flat[:total]
    return out_flat.reshape(orig_shape)


def _polyloss_ref(pred, true):
    """Pure-JAX reference mirroring the PyTorch module."""
    x = pred.astype(jnp.float32)
    y = true.astype(jnp.float32)
    bce = jnp.maximum(x, 0.0) - x * y + jnp.log1p(jnp.exp(-jnp.abs(x)))
    p = jax.nn.sigmoid(x)
    p_t = y * p + (1 - y) * (1 - p)
    af = y * ALPHA + (1 - y) * (1 - ALPHA)
    mf = (1.0 - p_t) ** GAMMA
    loss = bce * af * mf
    alpha_t = ALPHA * y + (1 - ALPHA) * (1 - y)
    loss = alpha_t * loss
    return loss + EPSILON * (1.0 - p_t) ** (GAMMA + 1.0)


if __name__ == "__main__":
    key = jax.random.PRNGKey(0)
    k1, k2 = jax.random.split(key)
    # NCHW inputs, as PyTorch would pass to the loss
    pred = jax.random.normal(k1, (2, 4, 16, 16), dtype=jnp.float32)
    true = (jax.random.uniform(k2, (2, 4, 16, 16)) > 0.5).astype(jnp.float32)

    out = polyloss(pred, true)
    jax.block_until_ready(out)

    ref = _polyloss_ref(pred, true)
    assert out.shape == pred.shape
    assert jnp.allclose(out, ref, atol=1e-5, rtol=1e-5), "mismatch vs reference"
    print("KERNEL_OK")
</pallas_src>

<mosaic_0001>
module attributes {stable_mosaic.version = 11 : i64} {
  func.func @_polyloss_kernel(%arg0: i32, %arg1: memref<4x512xf32, #tpu.memory_space<vmem>>, %arg2: memref<4x512xf32, #tpu.memory_space<vmem>>, %arg3: memref<4x512xf32, #tpu.memory_space<vmem>>) attributes {dimension_semantics = [#tpu.dimension_semantics<parallel>], iteration_bounds = array<i64: 1>, scalar_prefetch = 0 : i64, scratch_operands = 0 : i64, tpu.core_type = #tpu.core_type<tc>, window_params = [{transform_indices = @transform_0, window_bounds = array<i64: 4, 512>}, {transform_indices = @transform_1, window_bounds = array<i64: 4, 512>}, {transform_indices = @transform_2, window_bounds = array<i64: 4, 512>}]} {
    %c0 = arith.constant 0 : index
    %c0_0 = arith.constant 0 : index
    %0 = vector.load %arg1[%c0, %c0_0] : memref<4x512xf32, #tpu.memory_space<vmem>>, vector<4x512xf32>
    %c0_1 = arith.constant 0 : index
    %c0_2 = arith.constant 0 : index
    %1 = vector.load %arg2[%c0_1, %c0_2] : memref<4x512xf32, #tpu.memory_space<vmem>>, vector<4x512xf32>
    %2 = math.absf %0 : vector<4x512xf32>
    %cst = arith.constant 0.000000e+00 : f32
    %3 = vector.broadcast %cst : f32 to vector<4x512xf32>
    %4 = arith.subf %3, %2 : vector<4x512xf32>
    %5 = math.exp %4 : vector<4x512xf32>
    %cst_3 = arith.constant 0.000000e+00 : f32
    %6 = vector.broadcast %cst_3 : f32 to vector<4x512xf32>
    %7 = arith.maximumf %0, %6 : vector<4x512xf32>
    %8 = arith.mulf %0, %1 : vector<4x512xf32>
    %9 = arith.subf %7, %8 : vector<4x512xf32>
    %10 = math.log1p %5 : vector<4x512xf32>
    %11 = arith.addf %9, %10 : vector<4x512xf32>
    %cst_4 = arith.constant 1.000000e+00 : f32
    %12 = vector.broadcast %cst_4 : f32 to vector<4x512xf32>
    %13 = arith.addf %12, %5 : vector<4x512xf32>
    %14 = tpu.reciprocal %13 : vector<4x512xf32> -> vector<4x512xf32>
    %cst_5 = arith.constant 0.000000e+00 : f32
    %15 = vector.broadcast %cst_5 : f32 to vector<4x512xf32>
    %16 = arith.cmpf oge, %0, %15 : vector<4x512xf32>
    %17 = arith.mulf %5, %14 : vector<4x512xf32>
    %18 = arith.select %16, %14, %17 : vector<4x512xi1>, vector<4x512xf32>
    %19 = arith.addf %18, %1 : vector<4x512xf32>
    %20 = arith.mulf %1, %18 : vector<4x512xf32>
    %cst_6 = arith.constant 2.000000e+00 : f32
    %21 = vector.broadcast %cst_6 : f32 to vector<4x512xf32>
    %22 = arith.mulf %21, %20 : vector<4x512xf32>
    %23 = arith.subf %19, %22 : vector<4x512xf32>
    %cst_7 = arith.constant 5.000000e-01 : f32
    %24 = vector.broadcast %cst_7 : f32 to vector<4x512xf32>
    %25 = arith.mulf %24, %1 : vector<4x512xf32>
    %cst_8 = arith.constant 7.500000e-01 : f32
    %26 = vector.broadcast %cst_8 : f32 to vector<4x512xf32>
    %27 = arith.subf %26, %25 : vector<4x512xf32>
    %28 = math.sqrt %23 : vector<4x512xf32>
    %29 = arith.mulf %23, %28 : vector<4x512xf32>
    %30 = arith.mulf %11, %27 : vector<4x512xf32>
    %31 = arith.mulf %30, %29 : vector<4x512xf32>
    %32 = arith.mulf %27, %31 : vector<4x512xf32>
    %cst_9 = arith.constant 1.000000e+00 : f32
    %33 = vector.broadcast %cst_9 : f32 to vector<4x512xf32>
    %34 = arith.mulf %33, %29 : vector<4x512xf32>
    %35 = arith.mulf %34, %23 : vector<4x512xf32>
    %36 = arith.addf %32, %35 : vector<4x512xf32>
    %c0_10 = arith.constant 0 : index
    %c0_11 = arith.constant 0 : index
    %37 = vector.load %arg3[%c0_10, %c0_11] : memref<4x512xf32, #tpu.memory_space<vmem>>, vector<4x512xf32>
    tpu.vector_store %arg3[%c0_10, %c0_11], %36 {strides = array<i32>} : memref<4x512xf32, #tpu.memory_space<vmem>>, vector<4x512xf32>,
    return
  }
  func.func @transform_0(%arg0: i32) -> (i32, i32) {
    %c0_i32 = arith.constant 0 : i32
    %c0_i32_0 = arith.constant 0 : i32
    return %arg0, %c0_i32 : i32, i32
  }
  func.func @transform_1(%arg0: i32) -> (i32, i32) {
    %c0_i32 = arith.constant 0 : i32
    %c0_i32_0 = arith.constant 0 : i32
    return %arg0, %c0_i32 : i32, i32
  }
  func.func @transform_2(%arg0: i32) -> (i32, i32) {
    %c0_i32 = arith.constant 0 : i32
    %c0_i32_0 = arith.constant 0 : i32
    return %arg0, %c0_i32 : i32, i32
  }
}

</mosaic_0001>

<llo_original>
// kernel: tpu_custom_call.1
$region0: #{tpu_custom_call.1}
  #allocation0 [shape = 'u32[]', space=smem, size = 0x4, offset = 0x4, fixed_abs, tag = 'smem constant byte address 0x4 - core index']
  #allocation1 [shape = 'u32[72,128]{1,0:T(1,128)}', space=vmem, size = 0x9000, scoped, tag = 'internal scratch']
  %s0 = inlined_call_operand.hbm [shape: f32[4,512], index: 0, kind: input, shape index: {}]
  %s1 = inlined_call_operand.hbm [shape: f32[4,512], index: 1, kind: input, shape index: {}]
  %s2 = inlined_call_operand.hbm [shape: f32[4,512], index: 2, kind: output, shape index: {}]
  %s3 = sld [smem:[#allocation0]]
  $region26: #{tpu_custom_call.1} parent=0
    _
  %s5 = ssub.s32 1, %s3
  %s6 = scalar_select 0, %s5, %s3
  $region1: #{tpu_custom_call.1} parent=0
    #allocation2 [shape = 'u8[8192]{0}', space=vmem, size = 0x2000, scoped, tag = 'input window, operand 0, single buffered']
    #allocation3 [shape = 's32[1]{0}', space=sflag, size = 0x4, scoped, tag = 'scoped memory for tpu_custom_call.1']
    #allocation4 [shape = 's32[1]{0}', space=sflag, size = 0x4, scoped, tag = 'scoped memory for tpu_custom_call.1']
    #allocation5 [shape = 'u8[8192]{0}', space=vmem, size = 0x2000, scoped, tag = 'input window, operand 1, single buffered']
    #allocation6 [shape = 's32[1]{0}', space=sflag, size = 0x4, scoped, tag = 'scoped memory for tpu_custom_call.1']
    #allocation7 [shape = 'u8[8192]{0}', space=vmem, size = 0x2000, scoped, tag = 'output window, operand 0, single buffered']
    %7 = vsyncpa [#allocation3], 0
    %8 = vsyncpa [#allocation6], 0
    %9 = vsyncpa [#allocation4], 0
    // Predicated region
    $region2: #{tpu_custom_call.1} parent=1 // pred_check
      _
    $region3: #{tpu_custom_call.1} parent=1 // pred_check_branch
      %11 = sbr.rel (0) target = $region5
    $region4: #{tpu_custom_call.1} parent=1 // pred_region
      %13 = vsyncadd [#allocation3], 0
      %s15 = sshll.u32 %s0, 4
      %s16 = int_to_ptr.hbm [resolvable:$true] %s15
      %s17 = sshll.u32 [#allocation2], 4
      %s18 = int_to_ptr.vmem [resolvable:$true] %s17
      %20 = dma.hbm_to_vmem [thread:$0]  %s16, 256, %s18, [#allocation3]
    $region5: #{tpu_custom_call.1} parent=1 // pred_fallthru
      _
    // Predicated region
    $region6: #{tpu_custom_call.1} parent=1 // pred_check
      _
    $region7: #{tpu_custom_call.1} parent=1 // pred_check_branch
      %22 = sbr.rel (0) target = $region9
    $region8: #{tpu_custom_call.1} parent=1 // pred_region
      %24 = vsyncadd [#allocation6], 0
      %s26 = sshll.u32 %s1, 4
      %s27 = int_to_ptr.hbm [resolvable:$true] %s26
      %s28 = sshll.u32 [#allocation5], 4
      %s29 = int_to_ptr.vmem [resolvable:$true] %s28
      %31 = dma.hbm_to_vmem [thread:$0]  %s27, 256, %s29, [#allocation6]
    $region9: #{tpu_custom_call.1} parent=1 // pred_fallthru
      _
    // Predicated region
    $region10: #{tpu_custom_call.1} parent=1 // pred_check
      _
    $region11: #{tpu_custom_call.1} parent=1 // pred_check_branch
      %33 = sbr.rel (0) target = $region13
    $region12: #{tpu_custom_call.1} parent=1 // pred_region
      %35 = dma.done [#allocation3], 256
    $region13: #{tpu_custom_call.1} parent=1 // pred_fallthru
      _
    // Predicated region
    $region14: #{tpu_custom_call.1} parent=1 // pred_check
      _
    $region15: #{tpu_custom_call.1} parent=1 // pred_check_branch
      %37 = sbr.rel (0) target = $region17
    $region16: #{tpu_custom_call.1} parent=1 // pred_region
      %39 = dma.done [#allocation6], 256
    $region17: #{tpu_custom_call.1} parent=1 // pred_fallthru
      _
    %v40 = vld [vmem:[#allocation2] sm:$0xff]
    %v41 = vld [vmem:[#allocation2 + $0x8] sm:$0xff]
    %v42 = vld [vmem:[#allocation5] sm:$0xff]
    %v43 = vld [vmem:[#allocation5 + $0x8] sm:$0xff]
    %v44 = vand.u32 2147483647, %v40
    %v45 = vand.u32 2147483647, %v41
    %v46 = vsub.f32 0.0, %v44
    %v47 = vsub.f32 0.0, %v45
    %v48 = vmul.f32 %v46, 1.442695
    %v49 = vpow.pop %v48
    %v50 = vmul.f32 %v47, 1.442695
    %v51 = vpow.pop %v50
    %v52 = vmax.f32 %v40, 0.0
    %v53 = vmax.f32 %v41, 0.0
    %v54 = vmul.f32 %v40, %v42
    %v55 = vmul.f32 %v41, %v43
    %v56 = vsub.f32 %v52, %v54
    %v57 = vsub.f32 %v53, %v55
    %v58 = vadd.f32 %v49, 1.0
    %v59 = vlog2.pop %v58
    %v60 = vmul.f32 %v59, 0.6931472
    %v61 = vmul.f32 -0.5, %v49
    %v62 = vadd.f32 %v61, 1.0
    %v63 = vmul.f32 %v62, %v49
    %v64 = vand.u32 2147483647, %v49
    %vm65 = vcmp.lt.f32.partialorder %v64, 0.0004427343
    %v66 = vsel %vm65, %v63, %v60
    %v67 = vadd.f32 %v51, 1.0
    %v68 = vlog2.pop %v67
    %v69 = vmul.f32 %v68, 0.6931472
    %v70 = vmul.f32 -0.5, %v51
    %v71 = vadd.f32 %v70, 1.0
    %v72 = vmul.f32 %v71, %v51
    %v73 = vand.u32 2147483647, %v51
    %vm74 = vcmp.lt.f32.partialorder %v73, 0.0004427343
    %v75 = vsel %vm74, %v72, %v69
    %v76 = vadd.f32 %v56, %v66
    %v77 = vadd.f32 %v57, %v75
    %v78 = vadd.f32 %v49, 1.0
    %v79 = vadd.f32 %v51, 1.0
    %v80 = vrcp.pop %v78
    %v81 = vmul.f32 %v78, %v80
    %v82 = vsub.f32 1.0, %v81
    %v83 = vmul.f32 %v80, %v82
    %v84 = vadd.f32 %v80, %v83
    %vm85 = vweird.f32 %v78
    %vm86 = vweird.f32 %v80
    %vm87 = vmor %vm85, %vm86
    %v88 = vsel %vm87, %v80, %v84
    %v89 = vand.u32 2147483647, %v78
    %vm90 = vcmp.eq.f32.partialorder %v89, 8.507059e+37
    %v91 = vand.u32 %v78, 2147483648
    %v92 = vor.u32 1.1754944e-38, %v91
    %v93 = vsel %vm90, %v92, %v88
    %v94 = vrcp.pop %v79
    %v95 = vmul.f32 %v79, %v94
    %v96 = vsub.f32 1.0, %v95
    %v97 = vmul.f32 %v94, %v96
    %v98 = vadd.f32 %v94, %v97
    %vm99 = vweird.f32 %v79
    %vm100 = vweird.f32 %v94
    %vm101 = vmor %vm99, %vm100
    %v102 = vsel %vm101, %v94, %v98
    %v103 = vand.u32 2147483647, %v79
    %vm104 = vcmp.eq.f32.partialorder %v103, 8.507059e+37
    %v105 = vand.u32 %v79, 2147483648
    %v106 = vor.u32 1.1754944e-38, %v105
    %v107 = vsel %vm104, %v106, %v102
    %vm108 = vcmp.ge.f32.partialorder %v40, 0.0
    %vm109 = vcmp.ge.f32.partialorder %v41, 0.0
    %v110 = vmul.f32 %v49, %v93
    %v111 = vmul.f32 %v51, %v107
    %v112 = vsel %vm108, %v93, %v110
    %v113 = vsel %vm109, %v107, %v111
    %v114 = vadd.f32 %v112, %v42
    %v115 = vadd.f32 %v113, %v43
    %v116 = vmul.f32 %v42, %v112
    %v117 = vmul.f32 %v43, %v113
    %v118 = vmul.f32 %v116, 2.0
    %v119 = vmul.f32 %v117, 2.0
    %v120 = vsub.f32 %v114, %v118
    %v121 = vsub.f32 %v115, %v119
    %v122 = vmul.f32 %v42, 0.5
    %v123 = vmul.f32 %v43, 0.5
    %v124 = vsub.f32 0.75, %v122
    %v125 = vsub.f32 0.75, %v123
    %v126 = vrsqrt.pop %v120
    %v127 = vmul.f32 %v126, %v120
    %v128 = vmul.f32 %v127, %v126
    %v129 = vmul.f32 0.5, %v128
    %v130 = vsub.f32 1.5, %v129
    %v131 = vmul.f32 %v126, %v130
    %v132 = vmul.f32 %v120, %v131
    %vm133 = vcmp.eq.f32.partialorder %v120, inf
    %v134 = vsel %vm133, %v120, %v132
    %vm135 = vcmp.eq.f32.partialorder %v120, 0.0
    %v136 = vand.u32 %v120, 2147483648
    %v137 = vsel %vm135, %v136, %v134
    %v138 = vrsqrt.pop %v121
    %v139 = vmul.f32 %v138, %v121
    %v140 = vmul.f32 %v139, %v138
    %v141 = vmul.f32 0.5, %v140
    %v142 = vsub.f32 1.5, %v141
    %v143 = vmul.f32 %v138, %v142
    %v144 = vmul.f32 %v121, %v143
    %vm145 = vcmp.eq.f32.partialorder %v121, inf
    %v146 = vsel %vm145, %v121, %v144
    %vm147 = vcmp.eq.f32.partialorder %v121, 0.0
    %v148 = vand.u32 %v121, 2147483648
    %v149 = vsel %vm147, %v148, %v146
    %v150 = vmul.f32 %v120, %v137
    %v151 = vmul.f32 %v121, %v149
    %v152 = vmul.f32 %v76, %v124
    %v153 = vmul.f32 %v77, %v125
    %v154 = vmul.f32 %v152, %v150
    %v155 = vmul.f32 %v153, %v151
    %v156 = vmul.f32 %v124, %v154
    %v157 = vmul.f32 %v125, %v155
    %v158 = vmul.f32 %v150, %v120
    %v159 = vmul.f32 %v151, %v121
    %v160 = vadd.f32 %v156, %v158
    %v161 = vadd.f32 %v157, %v159
    %162 = vst [vmem:[#allocation7] sm:$0xff] %v160
    %163 = vst [vmem:[#allocation7 + $0x8] sm:$0xff] %v161
    // Predicated region
    $region18: #{tpu_custom_call.1} parent=1 // pred_check
      _
    $region19: #{tpu_custom_call.1} parent=1 // pred_check_branch
      %165 = sbr.rel (0) target = $region21
    $region20: #{tpu_custom_call.1} parent=1 // pred_region
      %167 = vsyncadd [#allocation4], 0
      %s169 = sshll.u32 [#allocation7], 4
      %s170 = int_to_ptr.vmem [resolvable:$true] %s169
      %s171 = sshll.u32 %s2, 4
      %s172 = int_to_ptr.hbm [resolvable:$true] %s171
      %174 = dma.vmem_to_hbm [thread:$0]  %s170, 256, %s172, [#allocation4]
    $region21: #{tpu_custom_call.1} parent=1 // pred_fallthru
      _
    // Predicated region
    $region22: #{tpu_custom_call.1} parent=1 // pred_check
      _
    $region23: #{tpu_custom_call.1} parent=1 // pred_check_branch
      %176 = sbr.rel (0) target = $region25
    $region24: #{tpu_custom_call.1} parent=1 // pred_region
      %178 = dma.done [#allocation4], 256
    $region25: #{tpu_custom_call.1} parent=1 // pred_fallthru
      _
    %179 = vsyncpa [#allocation3], 1
    %180 = vsyncpa [#allocation6], 1
    %181 = vsyncpa [#allocation4], 1

</llo_original>
